<compile_context>
chip_gen: v7x
topology: tpu7x:2x2x1
jax: 0.10.0
libtpu: 0.0.40
codegen_flags: <defaults>
</compile_context>

<pallas_src>
import jax
import jax.numpy as jnp
from jax.experimental import pallas as pl
from jax.experimental.pallas import tpu as pltpu

LN_EPS = 1e-5  # nn.LayerNorm default


def _round_up(x, m):
    return ((x + m - 1) // m) * m


def _vmem_budget_bytes():
    """~85% of per-core VMEM capacity (headroom for Mosaic internal scratch)."""
    cap = 128 << 20  # v5e/v6e default if query unavailable
    try:
        cap = int(pltpu.get_tpu_info().vmem_capacity_bytes)
    except Exception:
        pass
    return int(cap * 0.85)


def _pick_ff_tile(d_ff, target):
    """Largest FF tile <= target that exactly divides d_ff, preferring multiples
    of 256 (full v6e/v7x MXU width), falling back to 128 (v5e MXU width)."""
    target = max(128, int(target))
    for mult in (256, 128):
        if d_ff % mult == 0:
            t = (min(target, d_ff) // mult) * mult
            while t >= mult:
                if d_ff % t == 0:
                    return t
                t -= mult
    # TODO(synk): masked/padded-K path for d_ff with no 128-multiple divisor.
    return d_ff


def _vmem_estimate(tm, tf, d_model, d_ff, bx, bo, bcd):
    return (2 * tm * d_model * bx            # x row tile, double-buffered
            + 2 * tm * d_model * bo          # output tile, double-buffered
            + 2 * 2 * d_model * tf * bcd     # W1 + W2 slabs, double-buffered
            + 2 * (3 * d_model + tf) * 4     # gamma/beta/b1/b2 tiles
            + tm * d_model * bcd             # cached LayerNorm(x)
            + tm * d_model * 4               # f32 accumulator
            + 2 * tm * tf * 4)               # h intermediate (+ headroom)


def ffn_kernel(x_ref, g_ref, b_ref, w1_ref, b1_ref, w2_ref, b2_ref, o_ref,
               xn_ref, acc_ref):
    j = pl.program_id(1)
    nj = pl.num_programs(1)

    # --- once per row tile: LayerNorm with f32 stats, cached for all FF slabs ---
    @pl.when(j == 0)
    def _():
        x = x_ref[...].astype(jnp.float32)
        mean = jnp.mean(x, axis=-1, keepdims=True)
        var = jnp.mean(jnp.square(x - mean), axis=-1, keepdims=True)
        xn = (x - mean) * jax.lax.rsqrt(var + LN_EPS)
        xn = xn * g_ref[...].astype(jnp.float32) + b_ref[...].astype(jnp.float32)
        xn_ref[...] = xn.astype(xn_ref.dtype)

    # --- Linear(d_model -> ff slab) + SiLU (sigmoid on EUP), MXU in compute dtype ---
    h = jnp.dot(xn_ref[...], w1_ref[...], preferred_element_type=jnp.float32)
    h = h + b1_ref[...].astype(jnp.float32)
    h = h * jax.nn.sigmoid(h)  # SiLU
    # Dropout: identity in inference.
    # TODO(synk): training-mode dropout would need pltpu.prng_seed/prng_random_bits.

    # --- partial Linear(ff slab -> d_model): K-reduction into f32 accumulator ---
    part = jnp.dot(h.astype(w2_ref.dtype), w2_ref[...],
                   preferred_element_type=jnp.float32)

    @pl.when(j == 0)
    def _():  # first slab: write accumulator directly (saves the zero-init RMW)
        acc_ref[...] = part

    @pl.when(j > 0)
    def _():
        acc_ref[...] += part

    # --- finalize: add output bias and store lane-dense (tm, d_model) tile ---
    @pl.when(j == nj - 1)
    def _():
        o_ref[...] = (acc_ref[...] + b2_ref[...].astype(jnp.float32)
                      ).astype(o_ref.dtype)
        # Dropout: identity in inference.


def feed_forward_plus(x, gamma, beta, w1, b1, w2, b2, *,
                      tile_rows=None, tile_ff=512, compute_dtype=jnp.bfloat16):
    """x: (..., d_model) -> (..., d_model).

    compute_dtype: dtype fed to the MXU for both matmuls (weights + cached
    normalized activations). Defaults to bf16 (f32 accumulation); pass
    jnp.float32 explicitly when a full-precision matmul path is required.
    """
    orig_shape = x.shape
    d_model = orig_shape[-1]
    d_ff = w1.shape[1]

    x2d = x.reshape(-1, d_model)
    n = x2d.shape[0]

    bx = jnp.dtype(x.dtype).itemsize
    bo = bx
    bcd = jnp.dtype(compute_dtype).itemsize

    # Row multiple = sublane packing of the widest-packed dtype in play
    # (8 for f32, 16 for bf16, 32 for int8/fp8).
    row_mult = max(8, 32 // bcd, 32 // bx)

    budget = _vmem_budget_bytes()

    # FF tile: multiple of 256 preferred (v6e/v7x MXU width), exact divisor of d_ff.
    tf = _pick_ff_tile(d_ff, tile_ff)

    if tile_rows is None:
        # Bigger row tiles cut weight re-streaming; v5e/v6e (128 MiB VMEM) take 512,
        # v7x (64 MiB) stays at 256 so resident buffers fit comfortably.
        tile_rows = 512 if budget >= (96 << 20) else 256

    tm = min(_round_up(tile_rows, row_mult), _round_up(n, row_mult))
    # Shrink tm until the resident working set fits the per-generation VMEM budget.
    while tm > row_mult and _vmem_estimate(tm, tf, d_model, d_ff, bx, bo, bcd) > budget:
        tm = _round_up(max(tm // 2, row_mult), row_mult)
    # On v7x (2 TCs sharded over the "parallel" row axis), make sure there are at
    # least two row tiles when n allows it, so both cores get work.
    if budget < (80 << 20) and n > row_mult and pl.cdiv(n, tm) < 2:
        tm = _round_up(pl.cdiv(n, 2), row_mult)

    grid = (pl.cdiv(n, tm), d_ff // tf)

    # Weights streamed in the compute dtype (halves HBM traffic when bf16).
    w1c = w1.astype(compute_dtype)
    w2c = w2.astype(compute_dtype)

    # Lane-friendly 2D params.
    gamma2 = gamma.reshape(1, d_model)
    beta2 = beta.reshape(1, d_model)
    b1_2 = b1.reshape(1, d_ff)
    b2_2 = b2.reshape(1, d_model)

    est = _vmem_estimate(tm, tf, d_model, d_ff, bx, bo, bcd)
    vmem_limit = int(min(max(est + (4 << 20), 32 << 20), budget))

    # Advisory cost estimate so XLA schedules surrounding ops (e.g. the weight
    # casts) around a correctly weighted custom call.
    cost = pl.CostEstimate(
        flops=4 * n * d_model * d_ff,                       # two matmuls
        transcendentals=n * d_ff,                           # sigmoid in SiLU
        bytes_accessed=(n * d_model * bx + n * d_model * bo
                        + grid[0] * 2 * d_model * d_ff * bcd
                        + (3 * d_model + d_ff) * 4),
    )

    out = pl.pallas_call(
        ffn_kernel,
        out_shape=jax.ShapeDtypeStruct((n, d_model), x.dtype),
        grid_spec=pltpu.PrefetchScalarGridSpec(
            num_scalar_prefetch=0,
            grid=grid,
            in_specs=[
                pl.BlockSpec((tm, d_model), lambda i, j: (i, 0)),   # x rows (resident over j)
                pl.BlockSpec((1, d_model), lambda i, j: (0, 0)),    # gamma
                pl.BlockSpec((1, d_model), lambda i, j: (0, 0)),    # beta
                pl.BlockSpec((d_model, tf), lambda i, j: (0, j)),   # W1 slab
                pl.BlockSpec((1, tf), lambda i, j: (0, j)),         # b1 slab
                pl.BlockSpec((tf, d_model), lambda i, j: (j, 0)),   # W2 slab
                pl.BlockSpec((1, d_model), lambda i, j: (0, 0)),    # b2
            ],
            out_specs=pl.BlockSpec((tm, d_model), lambda i, j: (i, 0)),
            scratch_shapes=[
                pltpu.VMEM((tm, d_model), compute_dtype),   # cached LayerNorm(x)
                pltpu.VMEM((tm, d_model), jnp.float32),     # f32 output accumulator
            ],
        ),
        compiler_params=pltpu.CompilerParams(
            dimension_semantics=("parallel", "arbitrary"),
            vmem_limit_bytes=vmem_limit,
        ),
        cost_estimate=cost,
    )(x2d, gamma2, beta2, w1c, b1_2, w2c, b2_2)

    return out.reshape(orig_shape)


def reference(x, gamma, beta, w1, b1, w2, b2):
    hp = jax.lax.Precision.HIGHEST
    xf = x.astype(jnp.float32)
    mean = jnp.mean(xf, axis=-1, keepdims=True)
    var = jnp.mean((xf - mean) ** 2, axis=-1, keepdims=True)
    xn = (xf - mean) * jax.lax.rsqrt(var + LN_EPS) * gamma + beta
    h = jnp.dot(xn, w1, precision=hp) + b1
    h = h * jax.nn.sigmoid(h)
    return (jnp.dot(h, w2, precision=hp) + b2).astype(x.dtype)


if __name__ == "__main__":
    # Small but lane-dense shapes: batch=2, seq=12, d_model=128, d_ff=512.
    # n = 24 rows (not a tile multiple) exercises the OOB-masked tail path.
    B, S, d_model, d_ff = 2, 12, 128, 512
    key = jax.random.PRNGKey(0)
    kx, kw1, kb1, kw2, kb2 = jax.random.split(key, 5)

    x = jax.random.normal(kx, (B, S, d_model), jnp.float32)

    gamma = jnp.ones((d_model,), jnp.float32)
    beta = jnp.zeros((d_model,), jnp.float32)
    # Linear weights stored as (in, out) = transpose of PyTorch's (out, in).
    w1 = jax.random.normal(kw1, (d_model, d_ff), jnp.float32) * 0.1
    b1 = jax.random.normal(kb1, (d_ff,), jnp.float32) * 0.1
    w2 = jax.random.normal(kw2, (d_ff, d_model), jnp.float32) * 0.1
    b2 = jax.random.normal(kb2, (d_model,), jnp.float32) * 0.1

    ref = reference(x, gamma, beta, w1, b1, w2, b2)

    # 1) f32 matmul path, tile_ff=256 (multiple of 256) and tile_rows=16 so both
    #    the FF/K-reduction axis and the masked tail row tile are exercised.
    out_f32 = feed_forward_plus(x, gamma, beta, w1, b1, w2, b2,
                                tile_rows=16, tile_ff=256,
                                compute_dtype=jnp.float32)
    out_f32 = jax.block_until_ready(out_f32)
    assert out_f32.shape == x.shape
    assert jnp.allclose(out_f32, ref, atol=2e-3, rtol=2e-3), "f32 path mismatch vs reference"

    # 2) Default path: bf16 matmuls (f32 accumulation), auto generation-aware tiles.
    out_bf16 = feed_forward_plus(x, gamma, beta, w1, b1, w2, b2)
    out_bf16 = jax.block_until_ready(out_bf16)
    assert out_bf16.shape == x.shape
    assert jnp.allclose(out_bf16, ref, atol=1e-1, rtol=1e-1), "bf16 path mismatch vs reference"

    print("KERNEL_OK")
</pallas_src>

<mosaic_0001>
module attributes {stable_mosaic.version = 11 : i64} {
  func.func @ffn_kernel(%arg0: i32, %arg1: i32, %arg2: memref<16x128xf32, #tpu.memory_space<vmem>>, %arg3: memref<1x128xf32, #tpu.memory_space<vmem>>, %arg4: memref<1x128xf32, #tpu.memory_space<vmem>>, %arg5: memref<128x256xf32, #tpu.memory_space<vmem>>, %arg6: memref<1x256xf32, #tpu.memory_space<vmem>>, %arg7: memref<256x128xf32, #tpu.memory_space<vmem>>, %arg8: memref<1x128xf32, #tpu.memory_space<vmem>>, %arg9: memref<16x128xf32, #tpu.memory_space<vmem>>, %arg10: memref<16x128xf32, #tpu.memory_space<vmem>>, %arg11: memref<16x128xf32, #tpu.memory_space<vmem>>) attributes {dimension_semantics = [#tpu.dimension_semantics<parallel>, #tpu.dimension_semantics<arbitrary>], iteration_bounds = array<i64: 2, 2>, scalar_prefetch = 0 : i64, scratch_operands = 2 : i64, tpu.core_type = #tpu.core_type<tc>, window_params = [{transform_indices = @transform_0, window_bounds = array<i64: 16, 128>}, {pipeline_mode = #tpu.pipeline_mode<synchronous>, transform_indices = @transform_1, window_bounds = array<i64: 1, 128>}, {pipeline_mode = #tpu.pipeline_mode<synchronous>, transform_indices = @transform_2, window_bounds = array<i64: 1, 128>}, {transform_indices = @transform_3, window_bounds = array<i64: 128, 256>}, {transform_indices = @transform_4, window_bounds = array<i64: 1, 256>}, {transform_indices = @transform_5, window_bounds = array<i64: 256, 128>}, {pipeline_mode = #tpu.pipeline_mode<synchronous>, transform_indices = @transform_6, window_bounds = array<i64: 1, 128>}, {transform_indices = @transform_7, window_bounds = array<i64: 16, 128>}]} {
    %c0_i32 = arith.constant 0 : i32
    %0 = arith.cmpi eq, %arg1, %c0_i32 : i32
    %1 = arith.extui %0 : i1 to i32
    %c0_i32_0 = arith.constant 0 : i32
    %2 = arith.cmpi ne, %1, %c0_i32_0 : i32
    scf.if %2 {
      %c0_15 = arith.constant 0 : index
      %c0_16 = arith.constant 0 : index
      %26 = vector.load %arg2[%c0_15, %c0_16] : memref<16x128xf32, #tpu.memory_space<vmem>>, vector<16x128xf32>
      %cst_17 = arith.constant dense<0.000000e+00> : vector<16xf32>
      %27 = vector.multi_reduction <add>, %26, %cst_17 [1] : vector<16x128xf32> to vector<16xf32>
      %28 = vector.shape_cast %27 : vector<16xf32> to vector<16x1xf32>
      %cst_18 = arith.constant 1.280000e+02 : f32
      %29 = vector.broadcast %cst_18 : f32 to vector<16x1xf32>
      %30 = arith.divf %28, %29 : vector<16x1xf32>
      %31 = vector.broadcast %30 : vector<16x1xf32> to vector<16x128xf32>
      %32 = arith.subf %26, %31 : vector<16x128xf32>
      %33 = arith.mulf %32, %32 : vector<16x128xf32>
      %cst_19 = arith.constant dense<0.000000e+00> : vector<16xf32>
      %34 = vector.multi_reduction <add>, %33, %cst_19 [1] : vector<16x128xf32> to vector<16xf32>
      %35 = vector.shape_cast %34 : vector<16xf32> to vector<16x1xf32>
      %cst_20 = arith.constant 1.280000e+02 : f32
      %36 = vector.broadcast %cst_20 : f32 to vector<16x1xf32>
      %37 = arith.divf %35, %36 : vector<16x1xf32>
      %38 = vector.broadcast %30 : vector<16x1xf32> to vector<16x128xf32>
      %39 = arith.subf %26, %38 : vector<16x128xf32>
      %cst_21 = arith.constant 9.99999974E-6 : f32
      %40 = vector.broadcast %cst_21 : f32 to vector<16x1xf32>
      %41 = arith.addf %37, %40 : vector<16x1xf32>
      %42 = math.rsqrt %41 : vector<16x1xf32>
      %43 = vector.broadcast %42 : vector<16x1xf32> to vector<16x128xf32>
      %44 = arith.mulf %39, %43 : vector<16x128xf32>
      %c0_22 = arith.constant 0 : index
      %c0_23 = arith.constant 0 : index
      %45 = vector.load %arg3[%c0_22, %c0_23] : memref<1x128xf32, #tpu.memory_space<vmem>>, vector<1x128xf32>
      %46 = vector.broadcast %45 : vector<1x128xf32> to vector<16x128xf32>
      %47 = arith.mulf %44, %46 : vector<16x128xf32>
      %c0_24 = arith.constant 0 : index
      %c0_25 = arith.constant 0 : index
      %48 = vector.load %arg4[%c0_24, %c0_25] : memref<1x128xf32, #tpu.memory_space<vmem>>, vector<1x128xf32>
      %49 = vector.broadcast %48 : vector<1x128xf32> to vector<16x128xf32>
      %50 = arith.addf %47, %49 : vector<16x128xf32>
      %c0_26 = arith.constant 0 : index
      %c0_27 = arith.constant 0 : index
      %51 = vector.load %arg10[%c0_26, %c0_27] : memref<16x128xf32, #tpu.memory_space<vmem>>, vector<16x128xf32>
      tpu.vector_store %arg10[%c0_26, %c0_27], %50 {strides = array<i32>} : memref<16x128xf32, #tpu.memory_space<vmem>>, vector<16x128xf32>,
    } else {
    }
    %c0 = arith.constant 0 : index
    %c0_1 = arith.constant 0 : index
    %3 = vector.load %arg10[%c0, %c0_1] : memref<16x128xf32, #tpu.memory_space<vmem>>, vector<16x128xf32>
    %c0_2 = arith.constant 0 : index
    %c0_3 = arith.constant 0 : index
    %4 = vector.load %arg5[%c0_2, %c0_3] : memref<128x256xf32, #tpu.memory_space<vmem>>, vector<128x256xf32>
    %cst = arith.constant dense<0.000000e+00> : vector<16x256xf32>
    %5 = tpu.matmul %3, %4, %cst {dimension_numbers = #tpu.dot_dimension_numbers<[1], [0], [0], [1], [0, 0, 1, 1], [], []>} : vector<16x128xf32>, vector<128x256xf32>, vector<16x256xf32> -> vector<16x256xf32>
    %c0_4 = arith.constant 0 : index
    %c0_5 = arith.constant 0 : index
    %6 = vector.load %arg6[%c0_4, %c0_5] : memref<1x256xf32, #tpu.memory_space<vmem>>, vector<1x256xf32>
    %7 = vector.broadcast %6 : vector<1x256xf32> to vector<16x256xf32>
    %8 = arith.addf %5, %7 : vector<16x256xf32>
    %9 = arith.negf %8 : vector<16x256xf32>
    %10 = math.exp %9 : vector<16x256xf32>
    %cst_6 = arith.constant 1.000000e+00 : f32
    %11 = vector.broadcast %cst_6 : f32 to vector<16x256xf32>
    %12 = arith.addf %11, %10 : vector<16x256xf32>
    %13 = arith.divf %11, %12 : vector<16x256xf32>
    %14 = arith.mulf %8, %13 : vector<16x256xf32>
    %c0_7 = arith.constant 0 : index
    %c0_8 = arith.constant 0 : index
    %15 = vector.load %arg7[%c0_7, %c0_8] : memref<256x128xf32, #tpu.memory_space<vmem>>, vector<256x128xf32>
    %cst_9 = arith.constant dense<0.000000e+00> : vector<16x128xf32>
    %16 = tpu.matmul %14, %15, %cst_9 {dimension_numbers = #tpu.dot_dimension_numbers<[1], [0], [0], [1], [0, 0, 1, 1], [], []>} : vector<16x256xf32>, vector<256x128xf32>, vector<16x128xf32> -> vector<16x128xf32>
    %c0_i32_10 = arith.constant 0 : i32
    %17 = arith.cmpi eq, %arg1, %c0_i32_10 : i32
    %18 = arith.extui %17 : i1 to i32
    %c0_i32_11 = arith.constant 0 : i32
    %19 = arith.cmpi ne, %18, %c0_i32_11 : i32
    scf.if %19 {
      %c0_15 = arith.constant 0 : index
      %c0_16 = arith.constant 0 : index
      %26 = vector.load %arg11[%c0_15, %c0_16] : memref<16x128xf32, #tpu.memory_space<vmem>>, vector<16x128xf32>
      tpu.vector_store %arg11[%c0_15, %c0_16], %16 {strides = array<i32>} : memref<16x128xf32, #tpu.memory_space<vmem>>, vector<16x128xf32>,
    } else {
    }
    %c0_i32_12 = arith.constant 0 : i32
    %20 = arith.cmpi sgt, %arg1, %c0_i32_12 : i32
    %21 = arith.extui %20 : i1 to i32
    %c0_i32_13 = arith.constant 0 : i32
    %22 = arith.cmpi ne, %21, %c0_i32_13 : i32
    scf.if %22 {
      %c0_15 = arith.constant 0 : index
      %c0_16 = arith.constant 0 : index
      %26 = vector.load %arg11[%c0_15, %c0_16] : memref<16x128xf32, #tpu.memory_space<vmem>>, vector<16x128xf32>
      %27 = arith.addf %26, %16 : vector<16x128xf32>
      %c0_17 = arith.constant 0 : index
      %c0_18 = arith.constant 0 : index
      %28 = vector.load %arg11[%c0_17, %c0_18] : memref<16x128xf32, #tpu.memory_space<vmem>>, vector<16x128xf32>
      tpu.vector_store %arg11[%c0_17, %c0_18], %27 {strides = array<i32>} : memref<16x128xf32, #tpu.memory_space<vmem>>, vector<16x128xf32>,
    } else {
    }
    %c1_i32 = arith.constant 1 : i32
    %23 = arith.cmpi eq, %arg1, %c1_i32 : i32
    %24 = arith.extui %23 : i1 to i32
    %c0_i32_14 = arith.constant 0 : i32
    %25 = arith.cmpi ne, %24, %c0_i32_14 : i32
    scf.if %25 {
      %c0_15 = arith.constant 0 : index
      %c0_16 = arith.constant 0 : index
      %26 = vector.load %arg11[%c0_15, %c0_16] : memref<16x128xf32, #tpu.memory_space<vmem>>, vector<16x128xf32>
      %c0_17 = arith.constant 0 : index
      %c0_18 = arith.constant 0 : index
      %27 = vector.load %arg8[%c0_17, %c0_18] : memref<1x128xf32, #tpu.memory_space<vmem>>, vector<1x128xf32>
      %28 = vector.broadcast %27 : vector<1x128xf32> to vector<16x128xf32>
      %29 = arith.addf %26, %28 : vector<16x128xf32>
      %c0_19 = arith.constant 0 : index
      %c0_20 = arith.constant 0 : index
      %30 = vector.load %arg9[%c0_19, %c0_20] : memref<16x128xf32, #tpu.memory_space<vmem>>, vector<16x128xf32>
      tpu.vector_store %arg9[%c0_19, %c0_20], %29 {strides = array<i32>} : memref<16x128xf32, #tpu.memory_space<vmem>>, vector<16x128xf32>,
    } else {
    }
    return
  }
  func.func @transform_0(%arg0: i32, %arg1: i32) -> (i32, i32) {
    %c0_i32 = arith.constant 0 : i32
    %c0_i32_0 = arith.constant 0 : i32
    return %arg0, %c0_i32 : i32, i32
  }
  func.func @transform_1(%arg0: i32, %arg1: i32) -> (i32, i32) {
    %c0_i32 = arith.constant 0 : i32
    %c0_i32_0 = arith.constant 0 : i32
    %c0_i32_1 = arith.constant 0 : i32
    return %c0_i32, %c0_i32_0 : i32, i32
  }
  func.func @transform_2(%arg0: i32, %arg1: i32) -> (i32, i32) {
    %c0_i32 = arith.constant 0 : i32
    %c0_i32_0 = arith.constant 0 : i32
    %c0_i32_1 = arith.constant 0 : i32
    return %c0_i32, %c0_i32_0 : i32, i32
  }
  func.func @transform_3(%arg0: i32, %arg1: i32) -> (i32, i32) {
    %c0_i32 = arith.constant 0 : i32
    %c0_i32_0 = arith.constant 0 : i32
    return %c0_i32, %arg1 : i32, i32
  }
  func.func @transform_4(%arg0: i32, %arg1: i32) -> (i32, i32) {
    %c0_i32 = arith.constant 0 : i32
    %c0_i32_0 = arith.constant 0 : i32
    return %c0_i32, %arg1 : i32, i32
  }
  func.func @transform_5(%arg0: i32, %arg1: i32) -> (i32, i32) {
    %c0_i32 = arith.constant 0 : i32
    %c0_i32_0 = arith.constant 0 : i32
    return %arg1, %c0_i32 : i32, i32
  }
  func.func @transform_6(%arg0: i32, %arg1: i32) -> (i32, i32) {
    %c0_i32 = arith.constant 0 : i32
    %c0_i32_0 = arith.constant 0 : i32
    %c0_i32_1 = arith.constant 0 : i32
    return %c0_i32, %c0_i32_0 : i32, i32
  }
  func.func @transform_7(%arg0: i32, %arg1: i32) -> (i32, i32) {
    %c0_i32 = arith.constant 0 : i32
    %c0_i32_0 = arith.constant 0 : i32
    return %arg0, %c0_i32 : i32, i32
  }
}

</mosaic_0001>

<llo_original>
// kernel: tpu_custom_call.1
$region0: #{tpu_custom_call.1}
  #allocation0 [shape = 'u32[]', space=smem, size = 0x4, offset = 0x4, fixed_abs, tag = 'smem constant byte address 0x4 - core index']
  #allocation1 [shape = 'u32[144,128]{1,0:T(1,128)}', space=vmem, size = 0x12000, scoped, tag = 'internal scratch']
  #allocation2 [shape = 'f32[16,128]{1,0:T(8,128)}', space=vmem, size = 0x2000, scoped, tag = 'scratch operand']
  #allocation3 [shape = 'f32[16,128]{1,0:T(8,128)}', space=vmem, size = 0x2000, scoped, tag = 'scratch operand']
  %s0 = inlined_call_operand.hbm [shape: f32[24,128], index: 0, kind: input, shape index: {}]
  %s1 = inlined_call_operand.vmem [shape: f32[1,128], index: 1, kind: input, shape index: {}]
  %s2 = inlined_call_operand.vmem [shape: f32[1,128], index: 2, kind: input, shape index: {}]
  %s3 = inlined_call_operand.hbm [shape: f32[128,512], index: 3, kind: input, shape index: {}]
  %s4 = inlined_call_operand.vmem [shape: f32[1,512], index: 4, kind: input, shape index: {}]
  %s5 = inlined_call_operand.hbm [shape: f32[512,128], index: 5, kind: input, shape index: {}]
  %s6 = inlined_call_operand.vmem [shape: f32[1,128], index: 6, kind: input, shape index: {}]
  %s7 = inlined_call_operand.hbm [shape: f32[24,128], index: 7, kind: output, shape index: {}]
  %s8 = sld [smem:[#allocation0]]
  $region89: #{tpu_custom_call.1} parent=0
    _
  %s10 = ssub.s32 1, %s8
  %s11 = scalar_select 0, %s10, %s8
  $region1: #{tpu_custom_call.1} parent=0
    #allocation4 [shape = 'u8[16384]{0}', space=vmem, size = 0x4000, scoped, tag = 'input window, operand 0']
    #allocation5 [shape = 's32[2]{0}', space=sflag, size = 0x8, scoped, tag = 'scoped memory for tpu_custom_call.1']
    #allocation6 [shape = 's32[2]{0}', space=sflag, size = 0x8, scoped, tag = 'scoped memory for tpu_custom_call.1']
    #allocation7 [shape = 'u8[262144]{0}', space=vmem, size = 0x40000, scoped, tag = 'input window, operand 3']
    #allocation8 [shape = 's32[2]{0}', space=sflag, size = 0x8, scoped, tag = 'scoped memory for tpu_custom_call.1']
    #allocation9 [shape = 'u8[262144]{0}', space=vmem, size = 0x40000, scoped, tag = 'input window, operand 5']
    #allocation10 [shape = 'u8[16384]{0}', space=vmem, size = 0x4000, scoped, tag = 'output window, operand 0']
    %12 = vsyncpa [#allocation5], 0
    %s13 = scalar_lea.sflag [#allocation5], 1
    %14 = vsyncpa %s13, 0
    %15 = vsyncpa [#allocation8], 0
    %s16 = scalar_lea.sflag [#allocation8], 1
    %17 = vsyncpa %s16, 0
    %18 = vsyncpa [#allocation6], 0
    %s19 = scalar_lea.sflag [#allocation6], 1
    %20 = vsyncpa %s19, 0
    loop: start=0, step=1, limit=6
    $region2: #{tpu_custom_call.1} parent=1 // loop_pre_header
      _
    $region3: #{tpu_custom_call.1} parent=1 // loop_header
      %s22 = sphi 0, %s26
      %p23 = scmp.ge.s32.totalorder %s22, 6
      %s29 = sphi 0, %s41
      %s30 = sphi 0, %s37
      %s31 = sphi 0, %s29
      %s32 = sphi 0, %s30
      %s33 = sphi 0, %s31
      %s34 = sphi 0, %s32
      %s44 = sphi 0, %s46
      %s47 = sphi 0, %s44
      %s48 = sphi 0, %s47
      %s64 = sphi 0, %s48
      %s68 = sphi 0, %s68
      %s70 = sphi 0, %s68
      %s71 = sphi 0, %s70
      %s85 = sphi 0, %s71
      %s89 = sphi 0, %s89
      %s91 = sphi 0, %s89
      %s92 = sphi 0, %s91
      %s106 = sphi 0, %s92
      %s112 = sphi 0, %s114
      %s115 = sphi 0, %s112
      %s116 = sphi 0, %s115
      %s132 = sphi 0, %s116
      %s138 = sphi 0, %s140
      %s141 = sphi 0, %s138
      %s142 = sphi 0, %s141
      %s158 = sphi 0, %s142
      %s164 = sphi 0, %s166
      %s167 = sphi 0, %s164
      %s168 = sphi 0, %s167
      %s184 = sphi 0, %s168
      %s188 = sphi 0, %s188
      %s190 = sphi 0, %s188
      %s191 = sphi 0, %s190
      %s205 = sphi 0, %s191
      %s211 = sphi 0, %s213
      %s214 = sphi 0, %s211
      %s215 = sphi 0, %s214
      %s231 = sphi 0, %s215
    $region4: #{tpu_custom_call.1} parent=1 // loop_header_branch
      %25 = sbr.rel (%p23) target = $region8
    $region5: #{tpu_custom_call.1} parent=1 // loop_body
      %s27 = ssub.s32 %s22, 1
      %s28 = ssub.s32 %s22, 2
      %s35 = sadd.s32 1, %s30
      %p36 = scmp.ge.s32.totalorder %s35, 2
      %s37 = scalar_select %p36, 0, %s35
      %s38 = sadd.s32 1, %s29
      %s39 = scalar_select %p36, %s38, %s29
      %p40 = scmp.ge.s32.totalorder %s39, 2
      %s41 = scalar_select %p40, 0, %s39
      %s42 = ssub.s32 %s29, %s41
      %p43 = scmp.eq.s32.totalorder %s42, 0
      %s45 = sadd.s32 %s44, 1
      %s46 = scalar_select %p43, %s44, %s45
      %p49 = pneg %p43
      %p50 = scmp.eq.s32.totalorder %s22, 3
      %p51 = por %p49, %p50
      %p52 = scmp.ne.s32.totalorder %s44, %s47
      %p53 = scmp.eq.s32.totalorder %s22, 0
      %p54 = por %p52, %p53
      %p55 = scmp.ne.s32.totalorder %s44, %s47
      %p56 = scmp.eq.s32.totalorder %s27, 3
      %p57 = por %p55, %p56
      %p58 = scmp.ne.s32.totalorder %s47, %s48
      %p59 = scmp.eq.s32.totalorder %s27, 0
      %p60 = por %p58, %p59
      %p61 = scmp.ne.s32.totalorder %s47, %s48
      %p62 = scmp.eq.s32.totalorder %s28, 3
      %p63 = por %p61, %p62
      %p65 = scmp.ne.s32.totalorder %s48, %s64
      %p66 = scmp.eq.s32.totalorder %s28, 0
      %p67 = por %p65, %p66
      %s69 = sadd.s32 %s68, 1
      %p72 = scmp.eq.s32.totalorder %s22, 3
      %p73 = scmp.ne.s32.totalorder %s68, %s70
      %p74 = scmp.eq.s32.totalorder %s22, 0
      %p75 = por %p73, %p74
      %p76 = scmp.ne.s32.totalorder %s68, %s70
      %p77 = scmp.eq.s32.totalorder %s27, 3
      %p78 = por %p76, %p77
      %p79 = scmp.ne.s32.totalorder %s70, %s71
      %p80 = scmp.eq.s32.totalorder %s27, 0
      %p81 = por %p79, %p80
      %p82 = scmp.ne.s32.totalorder %s70, %s71
      %p83 = scmp.eq.s32.totalorder %s28, 3
      %p84 = por %p82, %p83
      %p86 = scmp.ne.s32.totalorder %s71, %s85
      %p87 = scmp.eq.s32.totalorder %s28, 0
      %p88 = por %p86, %p87
      %s90 = sadd.s32 %s89, 1
      %p93 = scmp.eq.s32.totalorder %s22, 3
      %p94 = scmp.ne.s32.totalorder %s89, %s91
      %p95 = scmp.eq.s32.totalorder %s22, 0
      %p96 = por %p94, %p95
      %p97 = scmp.ne.s32.totalorder %s89, %s91
      %p98 = scmp.eq.s32.totalorder %s27, 3
      %p99 = por %p97, %p98
      %p100 = scmp.ne.s32.totalorder %s91, %s92
      %p101 = scmp.eq.s32.totalorder %s27, 0
      %p102 = por %p100, %p101
      %p103 = scmp.ne.s32.totalorder %s91, %s92
      %p104 = scmp.eq.s32.totalorder %s28, 3
      %p105 = por %p103, %p104
      %p107 = scmp.ne.s32.totalorder %s92, %s106
      %p108 = scmp.eq.s32.totalorder %s28, 0
      %p109 = por %p107, %p108
      %s110 = ssub.s32 %s30, %s37
      %p111 = scmp.eq.s32.totalorder %s110, 0
      %s113 = sadd.s32 %s112, 1
      %s114 = scalar_select %p111, %s112, %s113
      %p117 = pneg %p111
      %p118 = scmp.eq.s32.totalorder %s22, 3
      %p119 = por %p117, %p118
      %p120 = scmp.ne.s32.totalorder %s112, %s115
      %p121 = scmp.eq.s32.totalorder %s22, 0
      %p122 = por %p120, %p121
      %p123 = scmp.ne.s32.totalorder %s112, %s115
      %p124 = scmp.eq.s32.totalorder %s27, 3
      %p125 = por %p123, %p124
      %p126 = scmp.ne.s32.totalorder %s115, %s116
      %p127 = scmp.eq.s32.totalorder %s27, 0
      %p128 = por %p126, %p127
      %p129 = scmp.ne.s32.totalorder %s115, %s116
      %p130 = scmp.eq.s32.totalorder %s28, 3
      %p131 = por %p129, %p130
      %p133 = scmp.ne.s32.totalorder %s116, %s132
      %p134 = scmp.eq.s32.totalorder %s28, 0
      %p135 = por %p133, %p134
      %s136 = ssub.s32 %s30, %s37
      %p137 = scmp.eq.s32.totalorder %s136, 0
      %s139 = sadd.s32 %s138, 1
      %s140 = scalar_select %p137, %s138, %s139
      %p143 = pneg %p137
      %p144 = scmp.eq.s32.totalorder %s22, 3
      %p145 = por %p143, %p144
      %p146 = scmp.ne.s32.totalorder %s138, %s141
      %p147 = scmp.eq.s32.totalorder %s22, 0
      %p148 = por %p146, %p147
      %p149 = scmp.ne.s32.totalorder %s138, %s141
      %p150 = scmp.eq.s32.totalorder %s27, 3
      %p151 = por %p149, %p150
      %p152 = scmp.ne.s32.totalorder %s141, %s142
      %p153 = scmp.eq.s32.totalorder %s27, 0
      %p154 = por %p152, %p153
      %p155 = scmp.ne.s32.totalorder %s141, %s142
      %p156 = scmp.eq.s32.totalorder %s28, 3
      %p157 = por %p155, %p156
      %p159 = scmp.ne.s32.totalorder %s142, %s158
      %p160 = scmp.eq.s32.totalorder %s28, 0
      %p161 = por %p159, %p160
      %s162 = ssub.s32 %s30, %s37
      %p163 = scmp.eq.s32.totalorder %s162, 0
      %s165 = sadd.s32 %s164, 1
      %s166 = scalar_select %p163, %s164, %s165
      %p169 = pneg %p163
      %p170 = scmp.eq.s32.totalorder %s22, 3
      %p171 = por %p169, %p170
      %p172 = scmp.ne.s32.totalorder %s164, %s167
      %p173 = scmp.eq.s32.totalorder %s22, 0
      %p174 = por %p172, %p173
      %p175 = scmp.ne.s32.totalorder %s164, %s167
      %p176 = scmp.eq.s32.totalorder %s27, 3
      %p177 = por %p175, %p176
      %p178 = scmp.ne.s32.totalorder %s167, %s168
      %p179 = scmp.eq.s32.totalorder %s27, 0
      %p180 = por %p178, %p179
      %p181 = scmp.ne.s32.totalorder %s167, %s168
      %p182 = scmp.eq.s32.totalorder %s28, 3
      %p183 = por %p181, %p182
      %p185 = scmp.ne.s32.totalorder %s168, %s184
      %p186 = scmp.eq.s32.totalorder %s28, 0
      %p187 = por %p185, %p186
      %s189 = sadd.s32 %s188, 1
      %p192 = scmp.eq.s32.totalorder %s22, 3
      %p193 = scmp.ne.s32.totalorder %s188, %s190
      %p194 = scmp.eq.s32.totalorder %s22, 0
      %p195 = por %p193, %p194
      %p196 = scmp.ne.s32.totalorder %s188, %s190
      %p197 = scmp.eq.s32.totalorder %s27, 3
      %p198 = por %p196, %p197
      %p199 = scmp.ne.s32.totalorder %s190, %s191
      %p200 = scmp.eq.s32.totalorder %s27, 0
      %p201 = por %p199, %p200
      %p202 = scmp.ne.s32.totalorder %s190, %s191
      %p203 = scmp.eq.s32.totalorder %s28, 3
      %p204 = por %p202, %p203
      %p206 = scmp.ne.s32.totalorder %s191, %s205
      %p207 = scmp.eq.s32.totalorder %s28, 0
      %p208 = por %p206, %p207
      %s209 = ssub.s32 %s29, %s41
      %p210 = scmp.eq.s32.totalorder %s209, 0
      %s212 = sadd.s32 %s211, 1
      %s213 = scalar_select %p210, %s211, %s212
      %p216 = pneg %p210
      %p217 = scmp.eq.s32.totalorder %s22, 3
      %p218 = por %p216, %p217
      %p219 = scmp.ne.s32.totalorder %s211, %s214
      %p220 = scmp.eq.s32.totalorder %s22, 0
      %p221 = por %p219, %p220
      %p222 = scmp.ne.s32.totalorder %s211, %s214
      %p223 = scmp.eq.s32.totalorder %s27, 3
      %p224 = por %p222, %p223
      %p225 = scmp.ne.s32.totalorder %s214, %s215
      %p226 = scmp.eq.s32.totalorder %s27, 0
      %p227 = por %p225, %p226
      %p228 = scmp.ne.s32.totalorder %s214, %s215
      %p229 = scmp.eq.s32.totalorder %s28, 3
      %p230 = por %p228, %p229
      %p232 = scmp.ne.s32.totalorder %s215, %s231
      %p233 = scmp.eq.s32.totalorder %s28, 0
      %p234 = por %p232, %p233
      %p235 = scmp.le.s32.totalorder 1, %s22
      %p236 = scmp.lt.s32.totalorder %s22, 5
      %p237 = pnand %p235, %p236
      %p238 = pneg %p237
      // Predicated region
      $region9: #{tpu_custom_call.1} parent=5 // pred_check
        _
      $region10: #{tpu_custom_call.1} parent=5 // pred_check_branch
        %240 = sbr.rel (%p237) target = $region12
      $region11: #{tpu_custom_call.1} parent=5 // pred_region
        %s241 = ssub.s32 %s22, 1
        // Predicated region
        $region13: #{tpu_custom_call.1} parent=11 // pred_check
          %p242 = pneg %p81
        $region14: #{tpu_custom_call.1} parent=11 // pred_check_branch
          %244 = sbr.rel (%p242) target = $region16
        $region15: #{tpu_custom_call.1} parent=11 // pred_region
          _
        $region16: #{tpu_custom_call.1} parent=11 // pred_fallthru
          _
        // Predicated region
        $region17: #{tpu_custom_call.1} parent=11 // pred_check
          %p245 = pneg %p102
        $region18: #{tpu_custom_call.1} parent=11 // pred_check_branch
          %247 = sbr.rel (%p245) target = $region20
        $region19: #{tpu_custom_call.1} parent=11 // pred_region
          _
        $region20: #{tpu_custom_call.1} parent=11 // pred_fallthru
          _
        // Predicated region
        $region21: #{tpu_custom_call.1} parent=11 // pred_check
          %p248 = pneg %p201
        $region22: #{tpu_custom_call.1} parent=11 // pred_check_branch
          %250 = sbr.rel (%p248) target = $region24
        $region23: #{tpu_custom_call.1} parent=11 // pred_region
          _
        $region24: #{tpu_custom_call.1} parent=11 // pred_fallthru
          _
      $region12: #{tpu_custom_call.1} parent=5 // pred_fallthru
        _
      %p251 = scmp.lt.s32.totalorder %s22, 4
      // Predicated region
      $region25: #{tpu_custom_call.1} parent=5 // pred_check
        %p252 = pneg %p251
      $region26: #{tpu_custom_call.1} parent=5 // pred_check_branch
        %254 = sbr.rel (%p252) target = $region28
      $region27: #{tpu_custom_call.1} parent=5 // pred_region
        // Predicated region
        $region29: #{tpu_custom_call.1} parent=27 // pred_check
          %p255 = pneg %p54
        $region30: #{tpu_custom_call.1} parent=27 // pred_check_branch
          %257 = sbr.rel (%p255) target = $region32
        $region31: #{tpu_custom_call.1} parent=27 // pred_region
          %s258 = sand.u32 %s44, 1
          %s259 = scalar_lea.sflag [#allocation5], %s258
          %s260 = sand.u32 %s44, 1
          %s261 = smul.addr %s260, 16
          %s262 = scalar_lea.vmem [#allocation4], %s261
          %s263 = smul.u32 2, %s29
          %s264 = ssub.s32 3, %s263
          %p265 = scmp.lt.s32.totalorder %s264, 2
          %s266 = scalar_select %p265, %s264, 2
          %s267 = smul.u32 128, %s266
          %s269 = ssub.s32 256, %s267
          %270 = vsyncadd %s259, %s269
          %p271 = scmp.ne.s32.totalorder 0, %s267
          %s272 = smul.addr %s263, 128
          %s273 = scalar_lea.hbm %s0, %s272
          %s274 = smul.u32 8, %s266
          %s275 = sshll.u32 %s262, 4
          %s276 = int_to_ptr.vmem [resolvable:$true] %s275
          %s277 = sshll.u32 %s274, 4
          %281 = dma.hbm_to_vmem [thread:$0]  (%p271), %s273, %s277, %s276, %s259, 128, 128, 8
        $region32: #{tpu_custom_call.1} parent=27 // pred_fallthru
          _
        // Predicated region
        $region33: #{tpu_custom_call.1} parent=27 // pred_check
          %p282 = pneg %p122
        $region34: #{tpu_custom_call.1} parent=27 // pred_check_branch
          %284 = sbr.rel (%p282) target = $region36
        $region35: #{tpu_custom_call.1} parent=27 // pred_region
          %s285 = sand.u32 %s22, 1
          %s286 = scalar_lea.sflag [#allocation8], %s285
          %s287 = sand.u32 %s112, 1
          %s288 = smul.addr %s287, 256
          %s289 = scalar_lea.vmem [#allocation7], %s288
          %s290 = smul.u32 2, %s30
          %s292 = ssub.s32 4096, 4096
          %293 = vsyncadd %s286, %s292
          %s294 = smul.addr %s290, 128
          %s295 = scalar_lea.hbm %s3, %s294
          %s296 = sshll.u32 %s289, 4
          %s297 = int_to_ptr.vmem [resolvable:$true] %s296
          %302 = dma.hbm_to_vmem [thread:$0]  %s295, 4096, %s297, %s286, 512, 256, 16
        $region36: #{tpu_custom_call.1} parent=27 // pred_fallthru
          _
        // Predicated region
        $region37: #{tpu_custom_call.1} parent=27 // pred_check
          %p303 = pneg %p148
        $region38: #{tpu_custom_call.1} parent=27 // pred_check_branch
          %305 = sbr.rel (%p303) target = $region40
        $region39: #{tpu_custom_call.1} parent=27 // pred_region
          %s306 = smul.u32 2, %s30
          %p307 = scmp.lt.s32.totalorder %s306, 3
          %s308 = scalar_select %p307, %s306, 3
          %s309 = scalar_lea.vmem %s4, %s308
          %s310 = smul.u32 2, %s30
        $region40: #{tpu_custom_call.1} parent=27 // pred_fallthru
          _
        // Predicated region
        $region41: #{tpu_custom_call.1} parent=27 // pred_check
          %p311 = pneg %p174
        $region42: #{tpu_custom_call.1} parent=27 // pred_check_branch
          %313 = sbr.rel (%p311) target = $region44
        $region43: #{tpu_custom_call.1} parent=27 // pred_region
          %s314 = sand.u32 %s22, 1
          %s315 = scalar_lea.sflag [#allocation8], %s314
          %s316 = sand.u32 %s164, 1
          %s317 = smul.addr %s316, 256
          %s318 = scalar_lea.vmem [#allocation9], %s317
          %s319 = smul.u32 32, %s30
          %s321 = ssub.s32 4096, 4096
          %322 = vsyncadd %s315, %s321
          %s323 = smul.addr %s319, 128
          %s324 = scalar_lea.hbm %s5, %s323
          %s325 = sshll.u32 %s318, 4
          %s326 = int_to_ptr.vmem [resolvable:$true] %s325
          %331 = dma.hbm_to_vmem [thread:$0]  %s324, 4096, %s326, %s315, 128, 128, 8
        $region44: #{tpu_custom_call.1} parent=27 // pred_fallthru
          _
      $region28: #{tpu_custom_call.1} parent=5 // pred_fallthru
        _
      %p332 = scmp.le.s32.totalorder 1, %s22
      %p333 = scmp.lt.s32.totalorder %s22, 5
      %p334 = pnand %p332, %p333
      %p335 = pneg %p334
      // Predicated region
      $region45: #{tpu_custom_call.1} parent=5 // pred_check
        _
      $region46: #{tpu_custom_call.1} parent=5 // pred_check_branch
        %337 = sbr.rel (%p334) target = $region48
      $region47: #{tpu_custom_call.1} parent=5 // pred_region
        %s338 = ssub.s32 %s22, 1
        %s339 = sand.u32 %s47, 1
        %s340 = scalar_lea.sflag [#allocation5], %s339
        %s341 = sand.u32 %s47, 1
        %s342 = smul.addr %s341, 16
        %s343 = scalar_lea.vmem [#allocation4], %s342
        // Predicated region
        $region49: #{tpu_custom_call.1} parent=47 // pred_check
          %p344 = pneg %p60
        $region50: #{tpu_custom_call.1} parent=47 // pred_check_branch
          %346 = sbr.rel (%p344) target = $region52
        $region51: #{tpu_custom_call.1} parent=47 // pred_region
          %347 = dma.done %s340, 256
        $region52: #{tpu_custom_call.1} parent=47 // pred_fallthru
          _
        %s348 = sand.u32 %s27, 1
        %s349 = scalar_lea.sflag [#allocation8], %s348
        %s350 = sand.u32 %s115, 1
        %s351 = smul.addr %s350, 256
        %s352 = scalar_lea.vmem [#allocation7], %s351
        // Predicated region
        $region53: #{tpu_custom_call.1} parent=47 // pred_check
          %p353 = pneg %p128
        $region54: #{tpu_custom_call.1} parent=47 // pred_check_branch
          %355 = sbr.rel (%p353) target = $region56
        $region55: #{tpu_custom_call.1} parent=47 // pred_region
          %356 = dma.done %s349, 4096
        $region56: #{tpu_custom_call.1} parent=47 // pred_fallthru
          _
        %s357 = sand.u32 %s27, 1
        %s358 = scalar_lea.sflag [#allocation8], %s357
        %s359 = sand.u32 %s167, 1
        %s360 = smul.addr %s359, 256
        %s361 = scalar_lea.vmem [#allocation9], %s360
        // Predicated region
        $region57: #{tpu_custom_call.1} parent=47 // pred_check
          %p362 = pneg %p180
        $region58: #{tpu_custom_call.1} parent=47 // pred_check_branch
          %364 = sbr.rel (%p362) target = $region60
        $region59: #{tpu_custom_call.1} parent=47 // pred_region
          %365 = dma.done %s358, 4096
        $region60: #{tpu_custom_call.1} parent=47 // pred_fallthru
          _
        %s366 = sand.u32 %s47, 1
        %s367 = scalar_lea.sflag [#allocation5], %s366
        %s368 = sand.u32 %s47, 1
        %s369 = smul.addr %s368, 16
        %s370 = scalar_lea.vmem [#allocation4], %s369
        %p371 = pneg %p60
        %p372 = pneg %p57
        %p373 = pneg %p81
        %p374 = pneg %p78
        %p375 = pneg %p102
        %p376 = pneg %p99
        %s377 = sand.u32 %s27, 1
        %s378 = scalar_lea.sflag [#allocation8], %s377
        %s379 = sand.u32 %s115, 1
        %s380 = smul.addr %s379, 256
        %s381 = scalar_lea.vmem [#allocation7], %s380
        %p382 = pneg %p128
        %p383 = pneg %p125
        %s384 = smul.u32 2, %s32
        %p385 = scmp.lt.s32.totalorder %s384, 3
        %s386 = scalar_select %p385, %s384, 3
        %s387 = scalar_lea.vmem %s4, %s386
        %p388 = pneg %p154
        %p389 = pneg %p151
        %s390 = sand.u32 %s27, 1
        %s391 = scalar_lea.sflag [#allocation8], %s390
        %s392 = sand.u32 %s167, 1
        %s393 = smul.addr %s392, 256
        %s394 = scalar_lea.vmem [#allocation9], %s393
        %p395 = pneg %p180
        %p396 = pneg %p177
        %p397 = pneg %p201
        %p398 = pneg %p198
        %p399 = pneg %p227
        %p400 = pneg %p224
        %s401 = sand.u32 %s214, 1
        %s402 = scalar_lea.sflag [#allocation6], %s401
        %s403 = sand.u32 %s214, 1
        %s404 = smul.addr %s403, 16
        %s405 = scalar_lea.vmem [#allocation10], %s404
        %s406 = smul.u32 2, %s31
        %s407 = ssub.s32 3, %s406
        %p408 = scmp.lt.s32.totalorder %s407, 2
        %s409 = scalar_select %p408, %s407, 2
        %s410 = smul.u32 128, %s409
        %s411 = smul.u32 2, %s32
        %s412 = smul.u32 2, %s32
        %p413 = scmp.lt.s32.totalorder %s412, 3
        %s414 = scalar_select %p413, %s412, 3
        %s415 = scalar_lea.vmem %s4, %s414
        %s416 = smul.u32 2, %s32
        %s417 = smul.u32 32, %s32
        %s418 = smul.u32 2, %s31
        %s419 = ssub.s32 3, %s418
        %p420 = scmp.lt.s32.totalorder %s419, 2
        %s421 = scalar_select %p420, %s419, 2
        %s422 = smul.u32 128, %s421
        %p423 = scmp.eq.s32.totalorder %s32, 0
        // Predicated region
        $region61: #{tpu_custom_call.1} parent=47 // pred_check
          %p424 = pneg %p423
        $region62: #{tpu_custom_call.1} parent=47 // pred_check_branch
          %426 = sbr.rel (%p424) target = $region64
        $region63: #{tpu_custom_call.1} parent=47 // pred_region
          %v427 = vld [vmem:[%s343] sm:$0xff]
          %v428 = vld [vmem:[%s343 + $0x8] sm:$0xff]
          %429 = vadd.xlane.f32.xlu0 %v427
          %v430 = vpop.xlane.xlu0 %429
          %431 = vadd.xlane.f32.xlu0 %v428
          %v432 = vpop.xlane.xlu0 %431
          %v433 = vrcp.pop 128.0
          %v434 = vmul.f32 %v430, %v433
          %v435 = vmul.f32 %v432, %v433
          %v436 = vsub.f32 %v427, %v434
          %v437 = vsub.f32 %v428, %v435
          %v438 = vmul.f32 %v436, %v436
          %v439 = vmul.f32 %v437, %v437
          %440 = vadd.xlane.f32.xlu0 %v438
          %v441 = vpop.xlane.xlu0 %440
          %442 = vadd.xlane.f32.xlu0 %v439
          %v443 = vpop.xlane.xlu0 %442
          %v444 = vmul.f32 %v441, %v433
          %v445 = vmul.f32 %v443, %v433
          %v446 = vadd.f32 %v444, 1e-05
          %v447 = vadd.f32 %v445, 1e-05
          %v448 = vrsqrt.pop %v446
          %v449 = vrsqrt.pop %v447
          %v450 = vmul.f32 %v436, %v448
          %v451 = vmul.f32 %v437, %v449
          %v452 = vld [vmem:[%s1] sm:$0x1]
          %v454 = vlaneseq
          %v455 = vshrl.u32 %v454, 7
          %v456 = vsub.s32 0, %v455
          %v457 = vrot.slane %v452, %v456
          %v459 = vmul.f32 %v450, %v457
          %v460 = vmul.f32 %v451, %v457
          %v461 = vld [vmem:[%s2] sm:$0x1]
          %v463 = vlaneseq
          %v464 = vshrl.u32 %v463, 7
          %v465 = vsub.s32 0, %v464
          %v466 = vrot.slane %v461, %v465
          %v468 = vadd.f32 %v459, %v466
          %v469 = vadd.f32 %v460, %v466
          %470 = vst [vmem:[#allocation2] sm:$0xff] %v468
          %471 = vst [vmem:[#allocation2 + $0x8] sm:$0xff] %v469
        $region64: #{tpu_custom_call.1} parent=47 // pred_fallthru
          _
        %v472 = vld [vmem:[#allocation2] sm:$0xff]
        %v473 = vld [vmem:[#allocation2 + $0x8] sm:$0xff]
        %v474 = vld [vmem:[%s352] sm:$0xff]
        %v475 = vld [vmem:[%s352 + $0x8] sm:$0xff]
        %v476 = vld [vmem:[%s352 + $0x10] sm:$0xff]
        %v477 = vld [vmem:[%s352 + $0x18] sm:$0xff]
        %v478 = vld [vmem:[%s352 + $0x20] sm:$0xff]
        %v479 = vld [vmem:[%s352 + $0x28] sm:$0xff]
        %v480 = vld [vmem:[%s352 + $0x30] sm:$0xff]
        %v481 = vld [vmem:[%s352 + $0x38] sm:$0xff]
        %v482 = vld [vmem:[%s352 + $0x40] sm:$0xff]
        %v483 = vld [vmem:[%s352 + $0x48] sm:$0xff]
        %v484 = vld [vmem:[%s352 + $0x50] sm:$0xff]
        %v485 = vld [vmem:[%s352 + $0x58] sm:$0xff]
        %v486 = vld [vmem:[%s352 + $0x60] sm:$0xff]
        %v487 = vld [vmem:[%s352 + $0x68] sm:$0xff]
        %v488 = vld [vmem:[%s352 + $0x70] sm:$0xff]
        %v489 = vld [vmem:[%s352 + $0x78] sm:$0xff]
        %v490 = vld [vmem:[%s352 + $0x80] sm:$0xff]
        %v491 = vld [vmem:[%s352 + $0x88] sm:$0xff]
        %v492 = vld [vmem:[%s352 + $0x90] sm:$0xff]
        %v493 = vld [vmem:[%s352 + $0x98] sm:$0xff]
        %v494 = vld [vmem:[%s352 + $0xa0] sm:$0xff]
        %v495 = vld [vmem:[%s352 + $0xa8] sm:$0xff]
        %v496 = vld [vmem:[%s352 + $0xb0] sm:$0xff]
        %v497 = vld [vmem:[%s352 + $0xb8] sm:$0xff]
        %v498 = vld [vmem:[%s352 + $0xc0] sm:$0xff]
        %v499 = vld [vmem:[%s352 + $0xc8] sm:$0xff]
        %v500 = vld [vmem:[%s352 + $0xd0] sm:$0xff]
        %v501 = vld [vmem:[%s352 + $0xd8] sm:$0xff]
        %v502 = vld [vmem:[%s352 + $0xe0] sm:$0xff]
        %v503 = vld [vmem:[%s352 + $0xe8] sm:$0xff]
        %v504 = vld [vmem:[%s352 + $0xf0] sm:$0xff]
        %v505 = vld [vmem:[%s352 + $0xf8] sm:$0xff]
        %v506 = vld [vmem:[%s415] sm:$0x3]
        %v508 = vlaneseq
        %v509 = vshrl.u32 %v508, 7
        %v510 = vsub.s32 0, %v509
        %v511 = vrot.slane %v506, %v510
        %v512 = vlaneseq
        %v513 = vshrl.u32 %v512, 7
        %v514 = vsub.s32 1, %v513
        %v515 = vrot.slane %v506, %v514
        %518 = vmatprep.subr.mxu0 %v475
        %519 = vmatpush1.msra.mxu0 %v474
        %520 = vmatprep.subr.mxu0 %v477
        %521 = vmatpush1.msra.mxu0 %v476
        %522 = vmatprep.subr.mxu0 %v479
        %523 = vmatpush1.msra.mxu0 %v478
        %524 = vmatprep.subr.mxu0 %v481
        %525 = vmatpush1.msra.mxu0 %v480
        %526 = vmatprep.subr.mxu0 %v483
        %527 = vmatpush1.msra.mxu0 %v482
        %528 = vmatprep.subr.mxu0 %v485
        %529 = vmatpush1.msra.mxu0 %v484
        %530 = vmatprep.subr.mxu0 %v487
        %531 = vmatpush1.msra.mxu0 %v486
        %532 = vmatprep.subr.mxu0 %v489
        %533 = vmatpush1.msra.mxu0 %v488
        %534 = vmatprep.subr.mxu0 %v491
        %535 = vmatpush1.msra.mxu0 %v490
        %536 = vmatprep.subr.mxu0 %v493
        %537 = vmatpush1.msra.mxu0 %v492
        %538 = vmatprep.subr.mxu0 %v495
        %539 = vmatpush1.msra.mxu0 %v494
        %540 = vmatprep.subr.mxu0 %v497
        %541 = vmatpush1.msra.mxu0 %v496
        %542 = vmatprep.subr.mxu0 %v499
        %543 = vmatpush1.msra.mxu0 %v498
        %544 = vmatprep.subr.mxu0 %v501
        %545 = vmatpush1.msra.mxu0 %v500
        %546 = vmatprep.subr.mxu0 %v503
        %547 = vmatpush1.msra.mxu0 %v502
        %548 = vmatprep.subr.mxu0 %v505
        %549 = vmatpush1.msra.mxu0 %v504
        %550 = vmatprep.subr.mxu0 0.0
        %551 = vmatpush1.msra.mxu0 0.0
        %552 = vmatprep.subr.mxu0 0.0
        %553 = vmatpush1.msra.mxu0 0.0
        %554 = vmatprep.subr.mxu0 0.0
        %555 = vmatpush1.msra.mxu0 0.0
        %556 = vmatprep.subr.mxu0 0.0
        %557 = vmatpush1.msra.mxu0 0.0
        %558 = vmatprep.subr.mxu0 0.0
        %559 = vmatpush1.msra.mxu0 0.0
        %560 = vmatprep.subr.mxu0 0.0
        %561 = vmatpush1.msra.mxu0 0.0
        %562 = vmatprep.subr.mxu0 0.0
        %563 = vmatpush1.msra.mxu0 0.0
        %564 = vmatprep.subr.mxu0 0.0
        %565 = vmatpush1.msra.mxu0 0.0
        %566 = vmatprep.subr.mxu0 0.0
        %567 = vmatpush1.msra.mxu0 0.0
        %568 = vmatprep.subr.mxu0 0.0
        %569 = vmatpush1.msra.mxu0 0.0
        %570 = vmatprep.subr.mxu0 0.0
        %571 = vmatpush1.msra.mxu0 0.0
        %572 = vmatprep.subr.mxu0 0.0
        %573 = vmatpush1.msra.mxu0 0.0
        %574 = vmatprep.subr.mxu0 0.0
        %575 = vmatpush1.msra.mxu0 0.0
        %576 = vmatprep.subr.mxu0 0.0
        %577 = vmatpush1.msra.mxu0 0.0
        %578 = vmatprep.subr.mxu0 0.0
        %579 = vmatpush1.msra.mxu0 0.0
        %580 = vmatprep.subr.mxu0 0.0
        %581 = vmatpush1.msra.mxu0 0.0
        %582 = vmatprep.mubr.f32.mxu0 0.0
        %583 = vmatmul.mubr.f32.gmra.mrb[0].mxu0 %v472
        %v584 = vpop.f32.mrb[0].mxu0
        %v585 = vadd.f32 %v511, %v584
        %v586 = vpop.f32.mrb[0].mxu0
        %v587 = vadd.f32 %v515, %v586
        %588 = vmatprep.mubr.f32.mxu0 0.0
        %589 = vmatmul.mubr.f32.gmra.mrb[0].mxu0 %v473
        %v590 = vpop.f32.mrb[0].mxu0
        %v591 = vadd.f32 %v511, %v590
        %v592 = vpop.f32.mrb[0].mxu0
        %v593 = vadd.f32 %v515, %v592
        %594 = vdwg.mxu0
        %v595 = vxor.u32 %v585, 2147483648
        %v596 = vxor.u32 %v587, 2147483648
        %v597 = vxor.u32 %v591, 2147483648
        %v598 = vxor.u32 %v593, 2147483648
        %v599 = vmul.f32 %v595, 1.442695
        %v600 = vpow.pop %v599
        %v601 = vmul.f32 %v596, 1.442695
        %v602 = vpow.pop %v601
        %v603 = vmul.f32 %v597, 1.442695
        %v604 = vpow.pop %v603
        %v605 = vmul.f32 %v598, 1.442695
        %v606 = vpow.pop %v605
        %v607 = vadd.f32 %v600, 1.0
        %v608 = vadd.f32 %v602, 1.0
        %v609 = vadd.f32 %v604, 1.0
        %v610 = vadd.f32 %v606, 1.0
        %v611 = vrcp.pop %v607
        %v612 = vmul.f32 1.0, %v611
        %v613 = vrcp.pop %v608
        %v614 = vmul.f32 1.0, %v613
        %v615 = vrcp.pop %v609
        %v616 = vmul.f32 1.0, %v615
        %v617 = vrcp.pop %v610
        %v618 = vmul.f32 1.0, %v617
        %v619 = vmul.f32 %v585, %v612
        %v620 = vmul.f32 %v587, %v614
        %v621 = vmul.f32 %v591, %v616
        %v622 = vmul.f32 %v593, %v618
        %v623 = vld [vmem:[%s361] sm:$0xff]
        %v624 = vld [vmem:[%s361 + $0x8] sm:$0xff]
        %v625 = vld [vmem:[%s361 + $0x10] sm:$0xff]
        %v626 = vld [vmem:[%s361 + $0x18] sm:$0xff]
        %v627 = vld [vmem:[%s361 + $0x20] sm:$0xff]
        %v628 = vld [vmem:[%s361 + $0x28] sm:$0xff]
        %v629 = vld [vmem:[%s361 + $0x30] sm:$0xff]
        %v630 = vld [vmem:[%s361 + $0x38] sm:$0xff]
        %v631 = vld [vmem:[%s361 + $0x40] sm:$0xff]
        %v632 = vld [vmem:[%s361 + $0x48] sm:$0xff]
        %v633 = vld [vmem:[%s361 + $0x50] sm:$0xff]
        %v634 = vld [vmem:[%s361 + $0x58] sm:$0xff]
        %v635 = vld [vmem:[%s361 + $0x60] sm:$0xff]
        %v636 = vld [vmem:[%s361 + $0x68] sm:$0xff]
        %v637 = vld [vmem:[%s361 + $0x70] sm:$0xff]
        %v638 = vld [vmem:[%s361 + $0x78] sm:$0xff]
        %v639 = vld [vmem:[%s361 + $0x80] sm:$0xff]
        %v640 = vld [vmem:[%s361 + $0x88] sm:$0xff]
        %v641 = vld [vmem:[%s361 + $0x90] sm:$0xff]
        %v642 = vld [vmem:[%s361 + $0x98] sm:$0xff]
        %v643 = vld [vmem:[%s361 + $0xa0] sm:$0xff]
        %v644 = vld [vmem:[%s361 + $0xa8] sm:$0xff]
        %v645 = vld [vmem:[%s361 + $0xb0] sm:$0xff]
        %v646 = vld [vmem:[%s361 + $0xb8] sm:$0xff]
        %v647 = vld [vmem:[%s361 + $0xc0] sm:$0xff]
        %v648 = vld [vmem:[%s361 + $0xc8] sm:$0xff]
        %v649 = vld [vmem:[%s361 + $0xd0] sm:$0xff]
        %v650 = vld [vmem:[%s361 + $0xd8] sm:$0xff]
        %v651 = vld [vmem:[%s361 + $0xe0] sm:$0xff]
        %v652 = vld [vmem:[%s361 + $0xe8] sm:$0xff]
        %v653 = vld [vmem:[%s361 + $0xf0] sm:$0xff]
        %v654 = vld [vmem:[%s361 + $0xf8] sm:$0xff]
        %655 = vmatprep.subr.mxu0 0.0
        %656 = vmatpush1.msra.mxu0 %v623
        %657 = vmatprep.subr.mxu0 0.0
        %658 = vmatpush1.msra.mxu0 %v624
        %659 = vmatprep.subr.mxu0 0.0
        %660 = vmatpush1.msra.mxu0 %v625
        %661 = vmatprep.subr.mxu0 0.0
        %662 = vmatpush1.msra.mxu0 %v626
        %663 = vmatprep.subr.mxu0 0.0
        %664 = vmatpush1.msra.mxu0 %v627
        %665 = vmatprep.subr.mxu0 0.0
        %666 = vmatpush1.msra.mxu0 %v628
        %667 = vmatprep.subr.mxu0 0.0
        %668 = vmatpush1.msra.mxu0 %v629
        %669 = vmatprep.subr.mxu0 0.0
        %670 = vmatpush1.msra.mxu0 %v630
        %671 = vmatprep.subr.mxu0 0.0
        %672 = vmatpush1.msra.mxu0 %v631
        %673 = vmatprep.subr.mxu0 0.0
        %674 = vmatpush1.msra.mxu0 %v632
        %675 = vmatprep.subr.mxu0 0.0
        %676 = vmatpush1.msra.mxu0 %v633
        %677 = vmatprep.subr.mxu0 0.0
        %678 = vmatpush1.msra.mxu0 %v634
        %679 = vmatprep.subr.mxu0 0.0
        %680 = vmatpush1.msra.mxu0 %v635
        %681 = vmatprep.subr.mxu0 0.0
        %682 = vmatpush1.msra.mxu0 %v636
        %683 = vmatprep.subr.mxu0 0.0
        %684 = vmatpush1.msra.mxu0 %v637
        %685 = vmatprep.subr.mxu0 0.0
        %686 = vmatpush1.msra.mxu0 %v638
        %687 = vmatprep.subr.mxu0 0.0
        %688 = vmatpush1.msra.mxu0 %v639
        %689 = vmatprep.subr.mxu0 0.0
        %690 = vmatpush1.msra.mxu0 %v640
        %691 = vmatprep.subr.mxu0 0.0
        %692 = vmatpush1.msra.mxu0 %v641
        %693 = vmatprep.subr.mxu0 0.0
        %694 = vmatpush1.msra.mxu0 %v642
        %695 = vmatprep.subr.mxu0 0.0
        %696 = vmatpush1.msra.mxu0 %v643
        %697 = vmatprep.subr.mxu0 0.0
        %698 = vmatpush1.msra.mxu0 %v644
        %699 = vmatprep.subr.mxu0 0.0
        %700 = vmatpush1.msra.mxu0 %v645
        %701 = vmatprep.subr.mxu0 0.0
        %702 = vmatpush1.msra.mxu0 %v646
        %703 = vmatprep.subr.mxu0 0.0
        %704 = vmatpush1.msra.mxu0 %v647
        %705 = vmatprep.subr.mxu0 0.0
        %706 = vmatpush1.msra.mxu0 %v648
        %707 = vmatprep.subr.mxu0 0.0
        %708 = vmatpush1.msra.mxu0 %v649
        %709 = vmatprep.subr.mxu0 0.0
        %710 = vmatpush1.msra.mxu0 %v650
        %711 = vmatprep.subr.mxu0 0.0
        %712 = vmatpush1.msra.mxu0 %v651
        %713 = vmatprep.subr.mxu0 0.0
        %714 = vmatpush1.msra.mxu0 %v652
        %715 = vmatprep.subr.mxu0 0.0
        %716 = vmatpush1.msra.mxu0 %v653
        %717 = vmatprep.subr.mxu0 0.0
        %718 = vmatpush1.msra.mxu0 %v654
        %719 = vmatprep.mubr.f32.mxu0 %v620
        %720 = vmatmul.mubr.f32.gmra.mrb[0].mxu0 %v619
        %v721 = vpop.f32.mrb[0].mxu0
        %v722 = vadd.f32 0.0, %v721
        %v723 = vpop.f32.mrb[0].mxu0
        %724 = vmatprep.mubr.f32.mxu0 %v622
        %725 = vmatmul.mubr.f32.gmra.mrb[0].mxu0 %v621
        %v726 = vpop.f32.mrb[0].mxu0
        %v727 = vadd.f32 0.0, %v726
        %v728 = vpop.f32.mrb[0].mxu0
        %729 = vdwg.mxu0
        // Predicated region
        $region65: #{tpu_custom_call.1} parent=47 // pred_check
          %p730 = pneg %p423
        $region66: #{tpu_custom_call.1} parent=47 // pred_check_branch
          %732 = sbr.rel (%p730) target = $region68
        $region67: #{tpu_custom_call.1} parent=47 // pred_region
          %733 = vst [vmem:[#allocation3] sm:$0xff] %v722
          %734 = vst [vmem:[#allocation3 + $0x8] sm:$0xff] %v727
        $region68: #{tpu_custom_call.1} parent=47 // pred_fallthru
          _
        %p735 = scmp.gt.s32.totalorder %s32, 0
        // Predicated region
        $region69: #{tpu_custom_call.1} parent=47 // pred_check
          %p736 = pneg %p735
        $region70: #{tpu_custom_call.1} parent=47 // pred_check_branch
          %738 = sbr.rel (%p736) target = $region72
        $region71: #{tpu_custom_call.1} parent=47 // pred_region
          %v739 = vld [vmem:[#allocation3] sm:$0xff]
          %v740 = vld [vmem:[#allocation3 + $0x8] sm:$0xff]
          %v741 = vadd.f32 %v739, %v722
          %v742 = vadd.f32 %v740, %v727
          %743 = vst [vmem:[#allocation3] sm:$0xff] %v741
          %744 = vst [vmem:[#allocation3 + $0x8] sm:$0xff] %v742
        $region72: #{tpu_custom_call.1} parent=47 // pred_fallthru
          _
        %p745 = scmp.eq.s32.totalorder %s32, 1
        // Predicated region
        $region73: #{tpu_custom_call.1} parent=47 // pred_check
          %p746 = pneg %p745
        $region74: #{tpu_custom_call.1} parent=47 // pred_check_branch
          %748 = sbr.rel (%p746) target = $region76
        $region75: #{tpu_custom_call.1} parent=47 // pred_region
          %v749 = vld [vmem:[#allocation3] sm:$0xff]
          %v750 = vld [vmem:[#allocation3 + $0x8] sm:$0xff]
          %v751 = vld [vmem:[%s6] sm:$0x1]
          %v753 = vlaneseq
          %v754 = vshrl.u32 %v753, 7
          %v755 = vsub.s32 0, %v754
          %v756 = vrot.slane %v751, %v755
          %v758 = vadd.f32 %v749, %v756
          %v759 = vadd.f32 %v750, %v756
          %760 = vst [vmem:[%s405] sm:$0xff] %v758
          %761 = vst [vmem:[%s405 + $0x8] sm:$0xff] %v759
        $region76: #{tpu_custom_call.1} parent=47 // pred_fallthru
          _
        %s762 = sand.u32 %s214, 1
        %s763 = scalar_lea.sflag [#allocation6], %s762
        %s764 = sand.u32 %s214, 1
        %s765 = smul.addr %s764, 16
        %s766 = scalar_lea.vmem [#allocation10], %s765
        // Predicated region
        $region77: #{tpu_custom_call.1} parent=47 // pred_check
          %p767 = pneg %p224
        $region78: #{tpu_custom_call.1} parent=47 // pred_check_branch
          %769 = sbr.rel (%p767) target = $region80
        $region79: #{tpu_custom_call.1} parent=47 // pred_region
          %s770 = smul.u32 2, %s31
          %s771 = ssub.s32 3, %s770
          %p772 = scmp.lt.s32.totalorder %s771, 2
          %s773 = scalar_select %p772, %s771, 2
          %s774 = smul.u32 128, %s773
          %s776 = ssub.s32 256, %s774
          %777 = vsyncadd %s763, %s776
          %p778 = scmp.ne.s32.totalorder 0, %s774
          %s779 = smul.addr %s770, 128
          %s780 = scalar_lea.hbm %s7, %s779
          %s781 = smul.u32 8, %s773
          %s782 = sshll.u32 %s766, 4
          %s783 = int_to_ptr.vmem [resolvable:$true] %s782
          %s784 = sshll.u32 %s781, 4
          %788 = dma.vmem_to_hbm [thread:$0]  (%p778), %s783, %s784, %s780, %s763, 128, 128, 8
        $region80: #{tpu_custom_call.1} parent=47 // pred_fallthru
          _
      $region48: #{tpu_custom_call.1} parent=5 // pred_fallthru
        _
      %p789 = scmp.le.s32.totalorder 2, %s22
      // Predicated region
      $region81: #{tpu_custom_call.1} parent=5 // pred_check
        %p790 = pneg %p789
      $region82: #{tpu_custom_call.1} parent=5 // pred_check_branch
        %792 = sbr.rel (%p790) target = $region84
      $region83: #{tpu_custom_call.1} parent=5 // pred_region
        %s793 = ssub.s32 %s22, 2
        // Predicated region
        $region85: #{tpu_custom_call.1} parent=83 // pred_check
          %p794 = pneg %p230
        $region86: #{tpu_custom_call.1} parent=83 // pred_check_branch
          %796 = sbr.rel (%p794) target = $region88
        $region87: #{tpu_custom_call.1} parent=83 // pred_region
          %s797 = sand.u32 %s215, 1
          %s798 = scalar_lea.sflag [#allocation6], %s797
          %s799 = sand.u32 %s215, 1
          %s800 = smul.addr %s799, 16
          %s801 = scalar_lea.vmem [#allocation10], %s800
          %802 = dma.done %s798, 256
        $region88: #{tpu_custom_call.1} parent=83 // pred_fallthru
          _
      $region84: #{tpu_custom_call.1} parent=5 // pred_fallthru
        _
    $region6: #{tpu_custom_call.1} parent=1 // loop_footer
      %s26 = sadd.s32 1, %s22
    $region7: #{tpu_custom_call.1} parent=1 // loop_footer_branch
      %21 = sbr.rel target = $region3
    $region8: #{tpu_custom_call.1} parent=1 // loop_exit
      _
    %803 = vsyncpa [#allocation5], 1
    %s804 = scalar_lea.sflag [#allocation5], 1
    %805 = vsyncpa %s804, 1
    %806 = vsyncpa [#allocation8], 1
    %s807 = scalar_lea.sflag [#allocation8], 1
    %808 = vsyncpa %s807, 1
    %809 = vsyncpa [#allocation6], 1
    %s810 = scalar_lea.sflag [#allocation6], 1
    %811 = vsyncpa %s810, 1

</llo_original>
